<compile_context>
chip_gen: v6e
topology: v6e:2x2x1
jax: 0.10.0
libtpu: 0.0.40
codegen_flags: <defaults>
</compile_context>

<pallas_src>
import functools

import jax
import jax.numpy as jnp
from jax.experimental import pallas as pl
from jax.experimental.pallas import tpu as pltpu

LANE = 128
SUBLANE = 8
_MIB = 1024 * 1024


def _round_up(x, m):
    return (x + m - 1) // m * m


def _supports_single_buffering():
    if not hasattr(pl, "Buffered"):
        return False
    try:
        pl.BlockSpec((SUBLANE, LANE), lambda i: (0, 0), pipeline_mode=pl.Buffered(1))
        return True
    except TypeError:
        return False


_SINGLE_BUFFER_WEIGHTS = _supports_single_buffering()


def _resident_spec(shape):
    """Constant-index (VMEM-resident) BlockSpec; single-buffered when supported."""
    if _SINGLE_BUFFER_WEIGHTS:
        return pl.BlockSpec(shape, lambda i: (0, 0), pipeline_mode=pl.Buffered(1))
    return pl.BlockSpec(shape, lambda i: (0, 0))


# --------------------------------------------------------------------------
# Kernel: full MLP on one row-tile.  Refs:
#   x_ref: [TILE_N, D0p]  (already in compute_dtype)
#   then (w_i: [D(i)p, D(i+1)p] compute_dtype, b_i: [1, D(i+1)p] f32) per layer
#   o_ref: [TILE_N, DLp]
# --------------------------------------------------------------------------
def _mlp_fused_kernel(x_ref, *refs, relu_flags, compute_dtype):
    o_ref = refs[-1]
    wb = refs[:-1]
    n_layers = len(relu_flags)
    h = x_ref[...]                                   # compute_dtype, no per-layer cast
    for i, relu in enumerate(relu_flags):
        w = wb[2 * i][...]
        b = wb[2 * i + 1][...]                       # f32 bias
        y = jnp.dot(h, w, preferred_element_type=jnp.float32)
        y = y + b                                    # f32 epilogue
        if relu:
            y = jnp.maximum(y, 0.0)
        # Keep inter-layer activations in compute_dtype (halves spills for bf16);
        # the final layer keeps f32 so the output cast loses nothing.
        h = y.astype(compute_dtype) if i + 1 < n_layers else y
    o_ref[...] = h.astype(o_ref.dtype)


# --------------------------------------------------------------------------
# Parameter prep: PyTorch layout (w:[out,in], b:[out]) -> transposed,
# zero-padded to lane multiples, weights in compute_dtype, bias in f32.
# --------------------------------------------------------------------------
def prepare_params(params, compute_dtype=jnp.float32):
    prepped = []
    for w, b in params:
        out_dim, in_dim = w.shape
        in_pad = _round_up(in_dim, LANE)
        out_pad = _round_up(out_dim, LANE)
        w_t = jnp.zeros((in_pad, out_pad), compute_dtype)
        w_t = w_t.at[:in_dim, :out_dim].set(w.T.astype(compute_dtype))
        b_p = jnp.zeros((1, out_pad), jnp.float32)
        b_p = b_p.at[0, :out_dim].set(b.astype(jnp.float32))
        prepped.append((w_t, b_p))
    return prepped


def _vmem_budget_bytes():
    # ~80% of physical per-core VMEM (v5e/v6e: 128 MiB, v7x: 64 MiB); leaves
    # headroom for compiler-internal scratch.
    try:
        cap = int(pltpu.get_tpu_info().vmem_capacity_bytes)
    except Exception:
        cap = 64 * _MIB                               # conservative (v7x) fallback
    return (cap * 4) // 5


def _vmem_estimate(tile_n, prepped, x_itemsize, out_itemsize, weight_buffers):
    d_in_pad = prepped[0][0].shape[0]
    d_out_pad = prepped[-1][0].shape[1]
    io = 2 * tile_n * (d_in_pad * x_itemsize + d_out_pad * out_itemsize)  # dbl-buf x/out
    ws = weight_buffers * sum(w.size * w.dtype.itemsize + b.size * b.dtype.itemsize
                              for w, b in prepped)
    d_max = max(max(w.shape) for w, _ in prepped)
    tmp = 3 * tile_n * d_max * 4                      # f32 intermediates / epilogue
    return io + ws + tmp


def _pick_row_tiling(n, tile_n_max, prepped, x_itemsize, out_itemsize,
                     weight_buffers, budget):
    n8 = _round_up(max(n, 1), SUBLANE)
    num_tiles = max(1, pl.cdiv(n8, tile_n_max))
    if num_tiles == 1 and n8 >= 2 * SUBLANE:
        num_tiles = 2           # >=2 grid steps so both v7x TensorCores get work
    tile_n = _round_up(pl.cdiv(n8, num_tiles), SUBLANE)
    # Snap to an MXU-friendly multiple of 128 only when it adds little padding.
    if tile_n >= LANE:
        snapped = _round_up(tile_n, LANE)
        if (snapped - tile_n) * num_tiles <= max(n8 // 16, SUBLANE):
            tile_n = snapped
    # Shrink tile_n until the estimate fits the generation budget.
    while (tile_n > SUBLANE and
           _vmem_estimate(tile_n, prepped, x_itemsize, out_itemsize,
                          weight_buffers) > budget):
        tile_n = max(SUBLANE, _round_up(tile_n // 2, SUBLANE))
    est = _vmem_estimate(tile_n, prepped, x_itemsize, out_itemsize, weight_buffers)
    if est > budget:
        # TODO(synk): streamed-weights fallback (extra grid axis over out-feature
        # blocks of the largest layer) instead of keeping every layer resident.
        raise ValueError(
            f"Resident-weight MLP needs ~{est} B of VMEM but the budget is "
            f"{budget} B; streamed-weights fallback not implemented.")
    n_pad = _round_up(n8, tile_n)
    return tile_n, n_pad, est


# --------------------------------------------------------------------------
# Wrapper matching MLP.forward
# --------------------------------------------------------------------------
def mlp_forward(x, params, last_activation=True, *,
                compute_dtype=jnp.float32, tile_n_max=512):
    """x: [N, D0]; params: list of (w [out,in], b [out]) as in nn.Linear."""
    n, d_in = x.shape
    n_layers = len(params)
    d_out = params[-1][0].shape[0]
    relu_flags = tuple((i < n_layers - 1) or last_activation
                       for i in range(n_layers))

    prepped = prepare_params(params, compute_dtype)
    d_in_pad = prepped[0][0].shape[0]
    d_out_pad = prepped[-1][0].shape[1]

    out_dtype = x.dtype
    x_itemsize = jnp.dtype(compute_dtype).itemsize
    out_itemsize = jnp.dtype(out_dtype).itemsize
    weight_buffers = 1 if _SINGLE_BUFFER_WEIGHTS else 2
    budget = _vmem_budget_bytes()

    tile_n, n_pad, est = _pick_row_tiling(
        n, tile_n_max, prepped, x_itemsize, out_itemsize, weight_buffers, budget)
    grid = (n_pad // tile_n,)

    # Cast to compute_dtype in the wrapper (streams half the bytes when bf16);
    # skip the pad materialization entirely when already aligned.
    x_c = x if x.dtype == jnp.dtype(compute_dtype) else x.astype(compute_dtype)
    if n_pad != n or d_in_pad != d_in:
        x_in = jnp.zeros((n_pad, d_in_pad), compute_dtype).at[:n, :d_in].set(x_c)
    else:
        x_in = x_c

    in_specs = [pl.BlockSpec((tile_n, d_in_pad), lambda i: (i, 0))]
    flat_inputs = [x_in]
    for w, b in prepped:
        in_specs.append(_resident_spec(w.shape))
        in_specs.append(_resident_spec(b.shape))
        flat_inputs.append(w)
        flat_inputs.append(b)
    out_spec = pl.BlockSpec((tile_n, d_out_pad), lambda i: (i, 0))

    w_bytes = sum(w.size * w.dtype.itemsize + b.size * b.dtype.itemsize
                  for w, b in prepped)
    flops = 2 * n_pad * sum(w.shape[0] * w.shape[1] for w, _ in prepped)
    bytes_accessed = (x_in.size * x_itemsize
                      + n_pad * d_out_pad * out_itemsize + w_bytes)
    vmem_limit = int(min(budget, max(est * 5 // 4, 32 * _MIB)))

    kernel = functools.partial(_mlp_fused_kernel, relu_flags=relu_flags,
                               compute_dtype=compute_dtype)
    out_pad_arr = pl.pallas_call(
        kernel,
        out_shape=jax.ShapeDtypeStruct((n_pad, d_out_pad), out_dtype),
        grid=grid,
        in_specs=in_specs,
        out_specs=out_spec,
        compiler_params=pltpu.CompilerParams(
            dimension_semantics=("parallel",),
            vmem_limit_bytes=vmem_limit),
        cost_estimate=pl.CostEstimate(flops=flops, transcendentals=0,
                                      bytes_accessed=bytes_accessed),
    )(*flat_inputs)

    return out_pad_arr[:n, :d_out]


# --------------------------------------------------------------------------
# Deterministic init mimicking nn.Linear default uniform(-1/sqrt(in), 1/sqrt(in)).
# Returns PyTorch-layout params: (w [out, in], b [out]).
# --------------------------------------------------------------------------
def init_mlp_params(key, hidden_size):
    params = []
    for i in range(len(hidden_size) - 1):
        in_dim, out_dim = hidden_size[i], hidden_size[i + 1]
        key, kw, kb = jax.random.split(key, 3)
        bound = 1.0 / jnp.sqrt(jnp.float32(in_dim))
        w = jax.random.uniform(kw, (out_dim, in_dim), jnp.float32, -bound, bound)
        b = jax.random.uniform(kb, (out_dim,), jnp.float32, -bound, bound)
        params.append((w, b))
    return params


def _reference(x, params, last_activation):
    ref = x
    for i, (w, b) in enumerate(params):
        ref = ref @ w.T + b
        if (i < len(params) - 1) or last_activation:
            ref = jnp.maximum(ref, 0.0)
    return ref


if __name__ == "__main__":
    # hidden_size defines the MLP: [32 -> 64 -> 16], last_activation=True
    hidden_size = [32, 64, 16]
    last_activation = True

    key = jax.random.PRNGKey(0)
    key, kx = jax.random.split(key)
    batch = 8
    x = jax.random.normal(kx, (batch, hidden_size[0]), jnp.float32)

    params = init_mlp_params(key, hidden_size)

    fwd = jax.jit(lambda xx: mlp_forward(xx, params, last_activation))
    out = fwd(x)
    jax.block_until_ready(out)

    ref = _reference(x, params, last_activation)
    assert out.shape == (batch, hidden_size[-1])
    assert jnp.allclose(out, ref, atol=1e-4, rtol=1e-4)

    # Multi-tile grid path (balanced row tiling, grid > 1).
    key, kx2 = jax.random.split(key)
    x_big = jax.random.normal(kx2, (1040, hidden_size[0]), jnp.float32)
    out_big = jax.jit(lambda xx: mlp_forward(xx, params, last_activation))(x_big)
    jax.block_until_ready(out_big)
    ref_big = _reference(x_big, params, last_activation)
    assert out_big.shape == (1040, hidden_size[-1])
    assert jnp.allclose(out_big, ref_big, atol=1e-4, rtol=1e-4)

    # bf16 compute path (weights + streamed activations); looser tolerance.
    out_bf16 = jax.jit(lambda xx: mlp_forward(
        xx, params, last_activation, compute_dtype=jnp.bfloat16))(x_big)
    jax.block_until_ready(out_bf16)
    assert jnp.allclose(out_bf16.astype(jnp.float32), ref_big, atol=8e-2, rtol=5e-2)

    print("KERNEL_OK")
</pallas_src>

<mosaic_0001>
module attributes {stable_mosaic.version = 11 : i64} {
  func.func @_mlp_fused_kernel(%arg0: i32, %arg1: memref<8x128xf32, #tpu.memory_space<vmem>>, %arg2: memref<128x128xf32, #tpu.memory_space<vmem>>, %arg3: memref<1x128xf32, #tpu.memory_space<vmem>>, %arg4: memref<128x128xf32, #tpu.memory_space<vmem>>, %arg5: memref<1x128xf32, #tpu.memory_space<vmem>>, %arg6: memref<8x128xf32, #tpu.memory_space<vmem>>) attributes {dimension_semantics = [#tpu.dimension_semantics<parallel>], iteration_bounds = array<i64: 1>, scalar_prefetch = 0 : i64, scratch_operands = 0 : i64, tpu.core_type = #tpu.core_type<tc>, window_params = [{transform_indices = @transform_0, window_bounds = array<i64: 8, 128>}, {pipeline_mode = #tpu.pipeline_mode<synchronous>, transform_indices = @transform_1, window_bounds = array<i64: 128, 128>}, {pipeline_mode = #tpu.pipeline_mode<synchronous>, transform_indices = @transform_2, window_bounds = array<i64: 1, 128>}, {pipeline_mode = #tpu.pipeline_mode<synchronous>, transform_indices = @transform_3, window_bounds = array<i64: 128, 128>}, {pipeline_mode = #tpu.pipeline_mode<synchronous>, transform_indices = @transform_4, window_bounds = array<i64: 1, 128>}, {transform_indices = @transform_5, window_bounds = array<i64: 8, 128>}]} {
    %c0 = arith.constant 0 : index
    %c0_0 = arith.constant 0 : index
    %0 = vector.load %arg1[%c0, %c0_0] : memref<8x128xf32, #tpu.memory_space<vmem>>, vector<8x128xf32>
    %c0_1 = arith.constant 0 : index
    %c0_2 = arith.constant 0 : index
    %1 = vector.load %arg2[%c0_1, %c0_2] : memref<128x128xf32, #tpu.memory_space<vmem>>, vector<128x128xf32>
    %c0_3 = arith.constant 0 : index
    %c0_4 = arith.constant 0 : index
    %2 = vector.load %arg3[%c0_3, %c0_4] : memref<1x128xf32, #tpu.memory_space<vmem>>, vector<1x128xf32>
    %cst = arith.constant dense<0.000000e+00> : vector<8x128xf32>
    %3 = tpu.matmul %0, %1, %cst {dimension_numbers = #tpu.dot_dimension_numbers<[1], [0], [0], [1], [0, 0, 1, 1], [], []>} : vector<8x128xf32>, vector<128x128xf32>, vector<8x128xf32> -> vector<8x128xf32>
    %4 = vector.broadcast %2 : vector<1x128xf32> to vector<8x128xf32>
    %5 = arith.addf %3, %4 : vector<8x128xf32>
    %cst_5 = arith.constant 0.000000e+00 : f32
    %6 = vector.broadcast %cst_5 : f32 to vector<8x128xf32>
    %7 = arith.maximumf %5, %6 : vector<8x128xf32>
    %c0_6 = arith.constant 0 : index
    %c0_7 = arith.constant 0 : index
    %8 = vector.load %arg4[%c0_6, %c0_7] : memref<128x128xf32, #tpu.memory_space<vmem>>, vector<128x128xf32>
    %c0_8 = arith.constant 0 : index
    %c0_9 = arith.constant 0 : index
    %9 = vector.load %arg5[%c0_8, %c0_9] : memref<1x128xf32, #tpu.memory_space<vmem>>, vector<1x128xf32>
    %cst_10 = arith.constant dense<0.000000e+00> : vector<8x128xf32>
    %10 = tpu.matmul %7, %8, %cst_10 {dimension_numbers = #tpu.dot_dimension_numbers<[1], [0], [0], [1], [0, 0, 1, 1], [], []>} : vector<8x128xf32>, vector<128x128xf32>, vector<8x128xf32> -> vector<8x128xf32>
    %11 = vector.broadcast %9 : vector<1x128xf32> to vector<8x128xf32>
    %12 = arith.addf %10, %11 : vector<8x128xf32>
    %cst_11 = arith.constant 0.000000e+00 : f32
    %13 = vector.broadcast %cst_11 : f32 to vector<8x128xf32>
    %14 = arith.maximumf %12, %13 : vector<8x128xf32>
    %c0_12 = arith.constant 0 : index
    %c0_13 = arith.constant 0 : index
    %15 = vector.load %arg6[%c0_12, %c0_13] : memref<8x128xf32, #tpu.memory_space<vmem>>, vector<8x128xf32>
    tpu.vector_store %arg6[%c0_12, %c0_13], %14 {strides = array<i32>} : memref<8x128xf32, #tpu.memory_space<vmem>>, vector<8x128xf32>,
    return
  }
  func.func @transform_0(%arg0: i32) -> (i32, i32) {
    %c0_i32 = arith.constant 0 : i32
    %c0_i32_0 = arith.constant 0 : i32
    return %arg0, %c0_i32 : i32, i32
  }
  func.func @transform_1(%arg0: i32) -> (i32, i32) {
    %c0_i32 = arith.constant 0 : i32
    %c0_i32_0 = arith.constant 0 : i32
    %c0_i32_1 = arith.constant 0 : i32
    return %c0_i32, %c0_i32_0 : i32, i32
  }
  func.func @transform_2(%arg0: i32) -> (i32, i32) {
    %c0_i32 = arith.constant 0 : i32
    %c0_i32_0 = arith.constant 0 : i32
    %c0_i32_1 = arith.constant 0 : i32
    return %c0_i32, %c0_i32_0 : i32, i32
  }
  func.func @transform_3(%arg0: i32) -> (i32, i32) {
    %c0_i32 = arith.constant 0 : i32
    %c0_i32_0 = arith.constant 0 : i32
    %c0_i32_1 = arith.constant 0 : i32
    return %c0_i32, %c0_i32_0 : i32, i32
  }
  func.func @transform_4(%arg0: i32) -> (i32, i32) {
    %c0_i32 = arith.constant 0 : i32
    %c0_i32_0 = arith.constant 0 : i32
    %c0_i32_1 = arith.constant 0 : i32
    return %c0_i32, %c0_i32_0 : i32, i32
  }
  func.func @transform_5(%arg0: i32) -> (i32, i32) {
    %c0_i32 = arith.constant 0 : i32
    %c0_i32_0 = arith.constant 0 : i32
    return %arg0, %c0_i32 : i32, i32
  }
}

</mosaic_0001>

<llo_original>
// kernel: _lambda_.1
$region0: #{_lambda_.1}
  #allocation0 [shape = 'u32[]', space=smem, size = 0x4, offset = 0x4, fixed_abs, tag = 'smem constant byte address 0x4 - core index']
  #allocation1 [shape = 'u32[144,128]{1,0:T(1,128)}', space=vmem, size = 0x12000, scoped, tag = 'internal scratch']
  %s0 = inlined_call_operand.vmem [shape: f32[8,128], index: 0, kind: input, shape index: {}]
  %s1 = inlined_call_operand.hbm [shape: f32[128,128], index: 1, kind: input, shape index: {}]
  %s2 = inlined_call_operand.vmem [shape: f32[1,128], index: 2, kind: input, shape index: {}]
  %s3 = inlined_call_operand.hbm [shape: f32[128,128], index: 3, kind: input, shape index: {}]
  %s4 = inlined_call_operand.vmem [shape: f32[1,128], index: 4, kind: input, shape index: {}]
  %s5 = inlined_call_operand.hbm [shape: f32[8,128], index: 5, kind: output, shape index: {}]
  %s6 = sld [smem:[#allocation0]]
  $region38: #{_lambda_.1} parent=0
    _
  %s8 = ssub.s32 1, %s6
  %s9 = scalar_select 0, %s8, %s6
  $region1: #{_lambda_.1} parent=0
    #allocation2 [shape = 'u8[65536]{0}', space=vmem, size = 0x10000, scoped, tag = 'input window, operand 1, single buffered']
    #allocation3 [shape = 's32[1]{0}', space=sflag, size = 0x4, scoped, tag = 'scoped memory for _lambda_.1']
    #allocation4 [shape = 's32[1]{0}', space=sflag, size = 0x4, scoped, tag = 'scoped memory for _lambda_.1']
    #allocation5 [shape = 'u8[65536]{0}', space=vmem, size = 0x10000, scoped, tag = 'input window, operand 3, single buffered']
    #allocation6 [shape = 's32[1]{0}', space=sflag, size = 0x4, scoped, tag = 'scoped memory for _lambda_.1']
    #allocation7 [shape = 'u8[4096]{0}', space=vmem, size = 0x1000, scoped, tag = 'output window, operand 0, single buffered']
    %10 = vsyncpa [#allocation3], 0
    %11 = vsyncpa [#allocation6], 0
    %12 = vsyncpa [#allocation4], 0
    // Predicated region
    $region2: #{_lambda_.1} parent=1 // pred_check
      _
    $region3: #{_lambda_.1} parent=1 // pred_check_branch
      %14 = sbr.rel (0) target = $region5
    $region4: #{_lambda_.1} parent=1 // pred_region
      _
    $region5: #{_lambda_.1} parent=1 // pred_fallthru
      _
    // Predicated region
    $region6: #{_lambda_.1} parent=1 // pred_check
      _
    $region7: #{_lambda_.1} parent=1 // pred_check_branch
      %16 = sbr.rel (0) target = $region9
    $region8: #{_lambda_.1} parent=1 // pred_region
      %s18 = ssub.s32 2048, 2048
      %19 = vsyncadd [#allocation3], %s18
      %s20 = sshll.u32 [#allocation2], 4
      %s21 = int_to_ptr.vmem [resolvable:$true] %s20
      %26 = dma.hbm_to_vmem [thread:$0]  %s1, 2048, %s21, [#allocation3], 128, 128, 8
    $region9: #{_lambda_.1} parent=1 // pred_fallthru
      _
    // Predicated region
    $region10: #{_lambda_.1} parent=1 // pred_check
      _
    $region11: #{_lambda_.1} parent=1 // pred_check_branch
      %28 = sbr.rel (0) target = $region13
    $region12: #{_lambda_.1} parent=1 // pred_region
      _
    $region13: #{_lambda_.1} parent=1 // pred_fallthru
      _
    // Predicated region
    $region14: #{_lambda_.1} parent=1 // pred_check
      _
    $region15: #{_lambda_.1} parent=1 // pred_check_branch
      %30 = sbr.rel (0) target = $region17
    $region16: #{_lambda_.1} parent=1 // pred_region
      %s32 = ssub.s32 2048, 2048
      %33 = vsyncadd [#allocation6], %s32
      %s34 = sshll.u32 [#allocation5], 4
      %s35 = int_to_ptr.vmem [resolvable:$true] %s34
      %40 = dma.hbm_to_vmem [thread:$0]  %s3, 2048, %s35, [#allocation6], 128, 128, 8
    $region17: #{_lambda_.1} parent=1 // pred_fallthru
      _
    // Predicated region
    $region18: #{_lambda_.1} parent=1 // pred_check
      _
    $region19: #{_lambda_.1} parent=1 // pred_check_branch
      %42 = sbr.rel (0) target = $region21
    $region20: #{_lambda_.1} parent=1 // pred_region
      _
    $region21: #{_lambda_.1} parent=1 // pred_fallthru
      _
    // Predicated region
    $region22: #{_lambda_.1} parent=1 // pred_check
      _
    $region23: #{_lambda_.1} parent=1 // pred_check_branch
      %44 = sbr.rel (0) target = $region25
    $region24: #{_lambda_.1} parent=1 // pred_region
      %45 = dma.done [#allocation3], 2048
    $region25: #{_lambda_.1} parent=1 // pred_fallthru
      _
    // Predicated region
    $region26: #{_lambda_.1} parent=1 // pred_check
      _
    $region27: #{_lambda_.1} parent=1 // pred_check_branch
      %47 = sbr.rel (0) target = $region29
    $region28: #{_lambda_.1} parent=1 // pred_region
      %48 = dma.done [#allocation6], 2048
    $region29: #{_lambda_.1} parent=1 // pred_fallthru
      _
    %v49 = vld [vmem:[%s0] sm:$0xff]
    %v50 = vld [vmem:[#allocation2] sm:$0xff]
    %v51 = vld [vmem:[#allocation2 + $0x8] sm:$0xff]
    %v52 = vld [vmem:[#allocation2 + $0x10] sm:$0xff]
    %v53 = vld [vmem:[#allocation2 + $0x18] sm:$0xff]
    %v54 = vld [vmem:[#allocation2 + $0x20] sm:$0xff]
    %v55 = vld [vmem:[#allocation2 + $0x28] sm:$0xff]
    %v56 = vld [vmem:[#allocation2 + $0x30] sm:$0xff]
    %v57 = vld [vmem:[#allocation2 + $0x38] sm:$0xff]
    %v58 = vld [vmem:[#allocation2 + $0x40] sm:$0xff]
    %v59 = vld [vmem:[#allocation2 + $0x48] sm:$0xff]
    %v60 = vld [vmem:[#allocation2 + $0x50] sm:$0xff]
    %v61 = vld [vmem:[#allocation2 + $0x58] sm:$0xff]
    %v62 = vld [vmem:[#allocation2 + $0x60] sm:$0xff]
    %v63 = vld [vmem:[#allocation2 + $0x68] sm:$0xff]
    %v64 = vld [vmem:[#allocation2 + $0x70] sm:$0xff]
    %v65 = vld [vmem:[#allocation2 + $0x78] sm:$0xff]
    %v66 = vld [vmem:[%s2] sm:$0x1]
    %v68 = vlaneseq
    %v69 = vshrl.u32 %v68, 7
    %v70 = vsub.s32 0, %v69
    %v71 = vrot.slane %v66, %v70
    %73 = vmatprep.subr.mxu0 0.0
    %74 = vmatpush1.msra.mxu0 %v65
    %75 = vmatprep.subr.mxu0 0.0
    %76 = vmatpush1.msra.mxu0 %v64
    %77 = vmatprep.subr.mxu0 0.0
    %78 = vmatpush1.msra.mxu0 %v63
    %79 = vmatprep.subr.mxu0 0.0
    %80 = vmatpush1.msra.mxu0 %v62
    %81 = vmatprep.subr.mxu0 0.0
    %82 = vmatpush1.msra.mxu0 %v61
    %83 = vmatprep.subr.mxu0 0.0
    %84 = vmatpush1.msra.mxu0 %v60
    %85 = vmatprep.subr.mxu0 0.0
    %86 = vmatpush1.msra.mxu0 %v59
    %87 = vmatprep.subr.mxu0 0.0
    %88 = vmatpush1.msra.mxu0 %v58
    %89 = vmatprep.subr.mxu0 0.0
    %90 = vmatpush1.msra.mxu0 %v57
    %91 = vmatprep.subr.mxu0 0.0
    %92 = vmatpush1.msra.mxu0 %v56
    %93 = vmatprep.subr.mxu0 0.0
    %94 = vmatpush1.msra.mxu0 %v55
    %95 = vmatprep.subr.mxu0 0.0
    %96 = vmatpush1.msra.mxu0 %v54
    %97 = vmatprep.subr.mxu0 0.0
    %98 = vmatpush1.msra.mxu0 %v53
    %99 = vmatprep.subr.mxu0 0.0
    %100 = vmatpush1.msra.mxu0 %v52
    %101 = vmatprep.subr.mxu0 0.0
    %102 = vmatpush1.msra.mxu0 %v51
    %103 = vmatprep.subr.mxu0 0.0
    %104 = vmatpush1.msra.mxu0 %v50
    %105 = vmatprep.subr.mxu0 0.0
    %106 = vmatpush2.msra.mxu0 0.0
    %107 = vmatprep.subr.mxu0 0.0
    %108 = vmatpush2.msra.mxu0 0.0
    %109 = vmatprep.subr.mxu0 0.0
    %110 = vmatpush2.msra.mxu0 0.0
    %111 = vmatprep.subr.mxu0 0.0
    %112 = vmatpush2.msra.mxu0 0.0
    %113 = vmatprep.subr.mxu0 0.0
    %114 = vmatpush2.msra.mxu0 0.0
    %115 = vmatprep.subr.mxu0 0.0
    %116 = vmatpush2.msra.mxu0 0.0
    %117 = vmatprep.subr.mxu0 0.0
    %118 = vmatpush2.msra.mxu0 0.0
    %119 = vmatprep.subr.mxu0 0.0
    %120 = vmatpush2.msra.mxu0 0.0
    %121 = vmatprep.subr.mxu0 0.0
    %122 = vmatpush2.msra.mxu0 0.0
    %123 = vmatprep.subr.mxu0 0.0
    %124 = vmatpush2.msra.mxu0 0.0
    %125 = vmatprep.subr.mxu0 0.0
    %126 = vmatpush2.msra.mxu0 0.0
    %127 = vmatprep.subr.mxu0 0.0
    %128 = vmatpush2.msra.mxu0 0.0
    %129 = vmatprep.subr.mxu0 0.0
    %130 = vmatpush2.msra.mxu0 0.0
    %131 = vmatprep.subr.mxu0 0.0
    %132 = vmatpush2.msra.mxu0 0.0
    %133 = vmatprep.subr.mxu0 0.0
    %134 = vmatpush2.msra.mxu0 0.0
    %135 = vmatprep.subr.mxu0 0.0
    %136 = vmatpush2.msra.mxu0 0.0
    %137 = vmatprep.mubr.f32.mxu0 0.0
    %138 = vmatmul.mubr.f32.gmra.mxu0 %v49
    %v139 = vpop.f32.mrf.mxu0
    %v140 = vadd.f32 %v71, %v139
    %v141 = vpop.f32.mrf.mxu0
    %142 = vdwg.mxu0
    %v143 = vmax.f32 %v140, 0.0
    %v144 = vld [vmem:[#allocation5] sm:$0xff]
    %v145 = vld [vmem:[#allocation5 + $0x8] sm:$0xff]
    %v146 = vld [vmem:[#allocation5 + $0x10] sm:$0xff]
    %v147 = vld [vmem:[#allocation5 + $0x18] sm:$0xff]
    %v148 = vld [vmem:[#allocation5 + $0x20] sm:$0xff]
    %v149 = vld [vmem:[#allocation5 + $0x28] sm:$0xff]
    %v150 = vld [vmem:[#allocation5 + $0x30] sm:$0xff]
    %v151 = vld [vmem:[#allocation5 + $0x38] sm:$0xff]
    %v152 = vld [vmem:[#allocation5 + $0x40] sm:$0xff]
    %v153 = vld [vmem:[#allocation5 + $0x48] sm:$0xff]
    %v154 = vld [vmem:[#allocation5 + $0x50] sm:$0xff]
    %v155 = vld [vmem:[#allocation5 + $0x58] sm:$0xff]
    %v156 = vld [vmem:[#allocation5 + $0x60] sm:$0xff]
    %v157 = vld [vmem:[#allocation5 + $0x68] sm:$0xff]
    %v158 = vld [vmem:[#allocation5 + $0x70] sm:$0xff]
    %v159 = vld [vmem:[#allocation5 + $0x78] sm:$0xff]
    %v160 = vld [vmem:[%s4] sm:$0x1]
    %v162 = vlaneseq
    %v163 = vshrl.u32 %v162, 7
    %v164 = vsub.s32 0, %v163
    %v165 = vrot.slane %v160, %v164
    %167 = vmatprep.subr.mxu0 0.0
    %168 = vmatpush1.msra.mxu0 %v159
    %169 = vmatprep.subr.mxu0 0.0
    %170 = vmatpush1.msra.mxu0 %v158
    %171 = vmatprep.subr.mxu0 0.0
    %172 = vmatpush1.msra.mxu0 %v157
    %173 = vmatprep.subr.mxu0 0.0
    %174 = vmatpush1.msra.mxu0 %v156
    %175 = vmatprep.subr.mxu0 0.0
    %176 = vmatpush1.msra.mxu0 %v155
    %177 = vmatprep.subr.mxu0 0.0
    %178 = vmatpush1.msra.mxu0 %v154
    %179 = vmatprep.subr.mxu0 0.0
    %180 = vmatpush1.msra.mxu0 %v153
    %181 = vmatprep.subr.mxu0 0.0
    %182 = vmatpush1.msra.mxu0 %v152
    %183 = vmatprep.subr.mxu0 0.0
    %184 = vmatpush1.msra.mxu0 %v151
    %185 = vmatprep.subr.mxu0 0.0
    %186 = vmatpush1.msra.mxu0 %v150
    %187 = vmatprep.subr.mxu0 0.0
    %188 = vmatpush1.msra.mxu0 %v149
    %189 = vmatprep.subr.mxu0 0.0
    %190 = vmatpush1.msra.mxu0 %v148
    %191 = vmatprep.subr.mxu0 0.0
    %192 = vmatpush1.msra.mxu0 %v147
    %193 = vmatprep.subr.mxu0 0.0
    %194 = vmatpush1.msra.mxu0 %v146
    %195 = vmatprep.subr.mxu0 0.0
    %196 = vmatpush1.msra.mxu0 %v145
    %197 = vmatprep.subr.mxu0 0.0
    %198 = vmatpush1.msra.mxu0 %v144
    %199 = vmatprep.subr.mxu0 0.0
    %200 = vmatpush2.msra.mxu0 0.0
    %201 = vmatprep.subr.mxu0 0.0
    %202 = vmatpush2.msra.mxu0 0.0
    %203 = vmatprep.subr.mxu0 0.0
    %204 = vmatpush2.msra.mxu0 0.0
    %205 = vmatprep.subr.mxu0 0.0
    %206 = vmatpush2.msra.mxu0 0.0
    %207 = vmatprep.subr.mxu0 0.0
    %208 = vmatpush2.msra.mxu0 0.0
    %209 = vmatprep.subr.mxu0 0.0
    %210 = vmatpush2.msra.mxu0 0.0
    %211 = vmatprep.subr.mxu0 0.0
    %212 = vmatpush2.msra.mxu0 0.0
    %213 = vmatprep.subr.mxu0 0.0
    %214 = vmatpush2.msra.mxu0 0.0
    %215 = vmatprep.subr.mxu0 0.0
    %216 = vmatpush2.msra.mxu0 0.0
    %217 = vmatprep.subr.mxu0 0.0
    %218 = vmatpush2.msra.mxu0 0.0
    %219 = vmatprep.subr.mxu0 0.0
    %220 = vmatpush2.msra.mxu0 0.0
    %221 = vmatprep.subr.mxu0 0.0
    %222 = vmatpush2.msra.mxu0 0.0
    %223 = vmatprep.subr.mxu0 0.0
    %224 = vmatpush2.msra.mxu0 0.0
    %225 = vmatprep.subr.mxu0 0.0
    %226 = vmatpush2.msra.mxu0 0.0
    %227 = vmatprep.subr.mxu0 0.0
    %228 = vmatpush2.msra.mxu0 0.0
    %229 = vmatprep.subr.mxu0 0.0
    %230 = vmatpush2.msra.mxu0 0.0
    %231 = vmatprep.mubr.f32.mxu0 0.0
    %232 = vmatmul.mubr.f32.gmra.mxu0 %v143
    %v233 = vpop.f32.mrf.mxu0
    %v234 = vadd.f32 %v165, %v233
    %v235 = vpop.f32.mrf.mxu0
    %236 = vdwg.mxu0
    %v237 = vmax.f32 %v234, 0.0
    %238 = vst [vmem:[#allocation7] sm:$0xff] %v237
    // Predicated region
    $region30: #{_lambda_.1} parent=1 // pred_check
      _
    $region31: #{_lambda_.1} parent=1 // pred_check_branch
      %240 = sbr.rel (0) target = $region33
    $region32: #{_lambda_.1} parent=1 // pred_region
      %s242 = ssub.s32 128, 128
      %243 = vsyncadd [#allocation4], %s242
      %s245 = sshll.u32 [#allocation7], 4
      %s246 = int_to_ptr.vmem [resolvable:$true] %s245
      %248 = dma.vmem_to_hbm [thread:$0]  %s246, 128, %s5, [#allocation4]
    $region33: #{_lambda_.1} parent=1 // pred_fallthru
      _
    // Predicated region
    $region34: #{_lambda_.1} parent=1 // pred_check
      _
    $region35: #{_lambda_.1} parent=1 // pred_check_branch
      %250 = sbr.rel (0) target = $region37
    $region36: #{_lambda_.1} parent=1 // pred_region
      %251 = dma.done [#allocation4], 128
    $region37: #{_lambda_.1} parent=1 // pred_fallthru
      _
    %252 = vsyncpa [#allocation3], 1
    %253 = vsyncpa [#allocation6], 1
    %254 = vsyncpa [#allocation4], 1

</llo_original>
